<compile_context>
chip_gen: v7x
topology: tpu7x:2x2x1
jax: 0.10.0
libtpu: 0.0.40
codegen_flags: <defaults>
</compile_context>

<pallas_src>
import functools
import math

import jax
import jax.numpy as jnp
from jax import lax
from jax.experimental import pallas as pl
from jax.experimental.pallas import tpu as pltpu


# ---------------------------------------------------------------------------
# Pass 1: row-wise L2 normalization (matches F.normalize(p=2, dim=1, eps=1e-12))
# ---------------------------------------------------------------------------
def _l2norm_rows_kernel(v_ref, out_ref):
    v = v_ref[...].astype(jnp.float32)                       # (TR, D)
    # 1/max(||v||, eps) == rsqrt(max(sum(v^2), eps^2)); rsqrt routes to the EUP.
    inv = lax.rsqrt(jnp.maximum(jnp.sum(v * v, axis=-1, keepdims=True), 1e-24))
    out_ref[...] = (v * inv).astype(out_ref.dtype)


def _l2_normalize_rows(v, block_rows, out_dtype=jnp.bfloat16):
    rows, d = v.shape
    return pl.pallas_call(
        _l2norm_rows_kernel,
        out_shape=jax.ShapeDtypeStruct((rows, d), out_dtype),
        grid=(rows // block_rows,),
        in_specs=[pl.BlockSpec((block_rows, d), lambda i: (i, 0))],
        out_specs=pl.BlockSpec((block_rows, d), lambda i: (i, 0)),
        compiler_params=pltpu.CompilerParams(dimension_semantics=("parallel",)),
    )(v)


# ---------------------------------------------------------------------------
# Pass 2: tiled cosine matmul + cosine-margin + scale
# ---------------------------------------------------------------------------
def _cosface_kernel(xn_ref, wn_ref, label_ref, out_ref, *, s, m, block_c):
    j = pl.program_id(1)                                     # C-tile index
    # (TB, D) x (TC, D) contracted on D -> (TB, TC); class-major wn feeds the
    # MXU directly (no transpose / XLU relayout), f32 accumulation.
    cosine = lax.dot_general(
        xn_ref[...], wn_ref[...],
        dimension_numbers=(((1,), (1,)), ((), ())),
        preferred_element_type=jnp.float32,
    )
    lbl = label_ref[...]                                     # (TB, 1) int32
    cls = lax.broadcasted_iota(jnp.int32, cosine.shape, 1) + j * block_c
    out_ref[...] = (jnp.where(cls == lbl, cosine - m, cosine) * s).astype(out_ref.dtype)


def _round_up(x, mult):
    return (x + mult - 1) // mult * mult


def cosface_forward(x, weight, label, s=30.0, m=0.4, *, block_b=256, block_c=512):
    B, D = x.shape
    C, D2 = weight.shape
    assert D == D2

    # Lane-dense padding: D and TC multiples of 128, TB multiple of 16 (bf16 packing).
    Dp = _round_up(D, 128)
    tb = min(block_b, _round_up(B, 16))
    tc = min(block_c, _round_up(C, 128))
    tb = _round_up(tb, 16)
    tc = _round_up(tc, 128)
    Bp = _round_up(B, tb)
    Cp = _round_up(C, tc)

    if (Bp, Dp) != (B, D):
        x = jnp.pad(x, ((0, Bp - B), (0, Dp - D)))
    if (Cp, Dp) != (C, D):
        weight = jnp.pad(weight, ((0, Cp - C), (0, Dp - D)))
    label2d = jnp.pad(label.astype(jnp.int32), (0, Bp - B)).reshape(Bp, 1)

    # Normalize each operand exactly once (bf16 outputs for the MXU).
    xn = _l2_normalize_rows(x, tb)
    wn = _l2_normalize_rows(weight, tc)

    kernel = functools.partial(_cosface_kernel, s=s, m=m, block_c=tc)
    out = pl.pallas_call(
        kernel,
        out_shape=jax.ShapeDtypeStruct((Bp, Cp), jnp.float32),
        grid=(Bp // tb, Cp // tc),
        in_specs=[
            pl.BlockSpec((tb, Dp), lambda i, j: (i, 0)),     # xn: block idx constant in j -> fetched once per i
            pl.BlockSpec((tc, Dp), lambda i, j: (j, 0)),     # wn
            pl.BlockSpec((tb, 1), lambda i, j: (i, 0)),      # label column
        ],
        out_specs=pl.BlockSpec((tb, tc), lambda i, j: (i, j)),
        compiler_params=pltpu.CompilerParams(
            dimension_semantics=("parallel", "parallel")),
    )(xn, wn, label2d)

    return out[:B, :C]


def xavier_uniform(key, shape):
    fan_out, fan_in = shape
    bound = math.sqrt(6.0 / (fan_in + fan_out))
    return jax.random.uniform(key, shape, jnp.float32, -bound, bound)


if __name__ == "__main__":
    # Small shapes that still exercise a multi-tile (2 x 2) grid and D/C padding.
    B, in_features, out_features = 32, 64, 256
    s, m = 30.0, 0.4

    key = jax.random.PRNGKey(0)
    k_x, k_w, k_l = jax.random.split(key, 3)
    x = jax.random.normal(k_x, (B, in_features), jnp.float32)
    weight = xavier_uniform(k_w, (out_features, in_features))
    label = jax.random.randint(k_l, (B,), 0, out_features, jnp.int32)

    out = cosface_forward(x, weight, label, s=s, m=m, block_b=16, block_c=128)
    jax.block_until_ready(out)

    # --- Reference checks -------------------------------------------------
    xn_f = x / jnp.maximum(jnp.linalg.norm(x, axis=1, keepdims=True), 1e-12)
    wn_f = weight / jnp.maximum(jnp.linalg.norm(weight, axis=1, keepdims=True), 1e-12)
    onehot = jax.nn.one_hot(label, out_features, dtype=jnp.float32)

    # Tight check against a reference that emulates the kernel's bf16 MXU
    # operands (f32 accumulation).
    cos_bf = (xn_f.astype(jnp.bfloat16).astype(jnp.float32)
              @ wn_f.astype(jnp.bfloat16).astype(jnp.float32).T)
    ref_bf = (cos_bf - m * onehot) * s
    assert jnp.allclose(out, ref_bf, atol=2e-2), "mismatch vs bf16-emulated reference"

    # Loose check against the full-f32 PyTorch-semantics reference
    # (difference bounded by bf16 operand rounding).
    ref_f32 = (xn_f @ wn_f.T - m * onehot) * s
    assert jnp.allclose(out, ref_f32, atol=0.25), "mismatch vs f32 reference"

    print("KERNEL_OK")
</pallas_src>

<mosaic_0001>
module attributes {stable_mosaic.version = 11 : i64} {
  func.func @_l2norm_rows_kernel(%arg0: i32, %arg1: memref<16x128xf32, #tpu.memory_space<vmem>>, %arg2: memref<16x128xbf16, #tpu.memory_space<vmem>>) attributes {dimension_semantics = [#tpu.dimension_semantics<parallel>], iteration_bounds = array<i64: 2>, scalar_prefetch = 0 : i64, scratch_operands = 0 : i64, tpu.core_type = #tpu.core_type<tc>, window_params = [{transform_indices = @transform_0, window_bounds = array<i64: 16, 128>}, {transform_indices = @transform_1, window_bounds = array<i64: 16, 128>}]} {
    %c0 = arith.constant 0 : index
    %c0_0 = arith.constant 0 : index
    %0 = vector.load %arg1[%c0, %c0_0] : memref<16x128xf32, #tpu.memory_space<vmem>>, vector<16x128xf32>
    %1 = arith.mulf %0, %0 : vector<16x128xf32>
    %cst = arith.constant dense<0.000000e+00> : vector<16xf32>
    %2 = vector.multi_reduction <add>, %1, %cst [1] : vector<16x128xf32> to vector<16xf32>
    %3 = vector.shape_cast %2 : vector<16xf32> to vector<16x1xf32>
    %cst_1 = arith.constant 1.000000e-24 : f32
    %4 = vector.broadcast %cst_1 : f32 to vector<16x1xf32>
    %5 = arith.maximumf %3, %4 : vector<16x1xf32>
    %6 = math.rsqrt %5 : vector<16x1xf32>
    %7 = vector.broadcast %6 : vector<16x1xf32> to vector<16x128xf32>
    %8 = arith.mulf %0, %7 : vector<16x128xf32>
    %9 = arith.truncf %8 : vector<16x128xf32> to vector<16x128xbf16>
    %c0_2 = arith.constant 0 : index
    %c0_3 = arith.constant 0 : index
    %10 = vector.load %arg2[%c0_2, %c0_3] : memref<16x128xbf16, #tpu.memory_space<vmem>>, vector<16x128xbf16>
    tpu.vector_store %arg2[%c0_2, %c0_3], %9 {strides = array<i32>} : memref<16x128xbf16, #tpu.memory_space<vmem>>, vector<16x128xbf16>,
    return
  }
  func.func @transform_0(%arg0: i32) -> (i32, i32) {
    %c0_i32 = arith.constant 0 : i32
    %c0_i32_0 = arith.constant 0 : i32
    return %arg0, %c0_i32 : i32, i32
  }
  func.func @transform_1(%arg0: i32) -> (i32, i32) {
    %c0_i32 = arith.constant 0 : i32
    %c0_i32_0 = arith.constant 0 : i32
    return %arg0, %c0_i32 : i32, i32
  }
}

</mosaic_0001>

<llo_original>
// kernel: tpu_custom_call.1
$region0: #{tpu_custom_call.1}
  #allocation0 [shape = 'u32[]', space=smem, size = 0x4, offset = 0x4, fixed_abs, tag = 'smem constant byte address 0x4 - core index']
  #allocation1 [shape = 'u32[144,128]{1,0:T(1,128)}', space=vmem, size = 0x12000, scoped, tag = 'internal scratch']
  %s0 = inlined_call_operand.hbm [shape: f32[32,128], index: 0, kind: input, shape index: {}]
  %s1 = inlined_call_operand.hbm [shape: bf16[32,128], index: 1, kind: output, shape index: {}]
  %s2 = sld [smem:[#allocation0]]
  $region41: #{tpu_custom_call.1} parent=0
    _
  %s4 = ssub.s32 1, %s2
  %s5 = scalar_select 0, %s4, %s2
  $region1: #{tpu_custom_call.1} parent=0
    #allocation2 [shape = 'u8[16384]{0}', space=vmem, size = 0x4000, scoped, tag = 'input window, operand 0']
    #allocation3 [shape = 's32[2]{0}', space=sflag, size = 0x8, scoped, tag = 'scoped memory for tpu_custom_call.1']
    #allocation4 [shape = 's32[2]{0}', space=sflag, size = 0x8, scoped, tag = 'scoped memory for tpu_custom_call.1']
    #allocation5 [shape = 'u8[8192]{0}', space=vmem, size = 0x2000, scoped, tag = 'output window, operand 0']
    %6 = vsyncpa [#allocation3], 0
    %s7 = scalar_lea.sflag [#allocation3], 1
    %8 = vsyncpa %s7, 0
    %9 = vsyncpa [#allocation4], 0
    %s10 = scalar_lea.sflag [#allocation4], 1
    %11 = vsyncpa %s10, 0
    loop: start=0, step=1, limit=4
    $region2: #{tpu_custom_call.1} parent=1 // loop_pre_header
      _
    $region3: #{tpu_custom_call.1} parent=1 // loop_header
      %s13 = sphi 0, %s17
      %p14 = scmp.ge.s32.totalorder %s13, 4
      %s23 = sphi 0, %s25
      %s26 = sphi 0, %s23
      %s27 = sphi 0, %s26
      %s43 = sphi 0, %s27
      %s49 = sphi 0, %s51
      %s52 = sphi 0, %s49
      %s53 = sphi 0, %s52
      %s69 = sphi 0, %s53
    $region4: #{tpu_custom_call.1} parent=1 // loop_header_branch
      %16 = sbr.rel (%p14) target = $region8
    $region5: #{tpu_custom_call.1} parent=1 // loop_body
      %s18 = ssub.s32 %s13, 1
      %s19 = ssub.s32 %s13, 2
      %s20 = sadd.s32 %s13, 1
      %s21 = ssub.s32 %s13, %s20
      %p22 = scmp.eq.s32.totalorder %s21, 0
      %s24 = sadd.s32 %s23, 1
      %s25 = scalar_select %p22, %s23, %s24
      %p28 = pneg %p22
      %p29 = scmp.eq.s32.totalorder %s13, 1
      %p30 = por %p28, %p29
      %p31 = scmp.ne.s32.totalorder %s23, %s26
      %p32 = scmp.eq.s32.totalorder %s13, 0
      %p33 = por %p31, %p32
      %p34 = scmp.ne.s32.totalorder %s23, %s26
      %p35 = scmp.eq.s32.totalorder %s18, 1
      %p36 = por %p34, %p35
      %p37 = scmp.ne.s32.totalorder %s26, %s27
      %p38 = scmp.eq.s32.totalorder %s18, 0
      %p39 = por %p37, %p38
      %p40 = scmp.ne.s32.totalorder %s26, %s27
      %p41 = scmp.eq.s32.totalorder %s19, 1
      %p42 = por %p40, %p41
      %p44 = scmp.ne.s32.totalorder %s27, %s43
      %p45 = scmp.eq.s32.totalorder %s19, 0
      %p46 = por %p44, %p45
      %s47 = ssub.s32 %s13, %s20
      %p48 = scmp.eq.s32.totalorder %s47, 0
      %s50 = sadd.s32 %s49, 1
      %s51 = scalar_select %p48, %s49, %s50
      %p54 = pneg %p48
      %p55 = scmp.eq.s32.totalorder %s13, 1
      %p56 = por %p54, %p55
      %p57 = scmp.ne.s32.totalorder %s49, %s52
      %p58 = scmp.eq.s32.totalorder %s13, 0
      %p59 = por %p57, %p58
      %p60 = scmp.ne.s32.totalorder %s49, %s52
      %p61 = scmp.eq.s32.totalorder %s18, 1
      %p62 = por %p60, %p61
      %p63 = scmp.ne.s32.totalorder %s52, %s53
      %p64 = scmp.eq.s32.totalorder %s18, 0
      %p65 = por %p63, %p64
      %p66 = scmp.ne.s32.totalorder %s52, %s53
      %p67 = scmp.eq.s32.totalorder %s19, 1
      %p68 = por %p66, %p67
      %p70 = scmp.ne.s32.totalorder %s53, %s69
      %p71 = scmp.eq.s32.totalorder %s19, 0
      %p72 = por %p70, %p71
      %p73 = scmp.le.s32.totalorder 1, %s13
      %p74 = scmp.lt.s32.totalorder %s13, 3
      %p75 = pnand %p73, %p74
      %p76 = pneg %p75
      // Predicated region
      $region9: #{tpu_custom_call.1} parent=5 // pred_check
        _
      $region10: #{tpu_custom_call.1} parent=5 // pred_check_branch
        %78 = sbr.rel (%p75) target = $region12
      $region11: #{tpu_custom_call.1} parent=5 // pred_region
        %s79 = ssub.s32 %s13, 1
      $region12: #{tpu_custom_call.1} parent=5 // pred_fallthru
        _
      %p80 = scmp.lt.s32.totalorder %s13, 2
      // Predicated region
      $region13: #{tpu_custom_call.1} parent=5 // pred_check
        %p81 = pneg %p80
      $region14: #{tpu_custom_call.1} parent=5 // pred_check_branch
        %83 = sbr.rel (%p81) target = $region16
      $region15: #{tpu_custom_call.1} parent=5 // pred_region
        // Predicated region
        $region17: #{tpu_custom_call.1} parent=15 // pred_check
          %p84 = pneg %p33
        $region18: #{tpu_custom_call.1} parent=15 // pred_check_branch
          %86 = sbr.rel (%p84) target = $region20
        $region19: #{tpu_custom_call.1} parent=15 // pred_region
          %s87 = sand.u32 %s23, 1
          %s88 = scalar_lea.sflag [#allocation3], %s87
          %s89 = sand.u32 %s23, 1
          %s90 = smul.addr %s89, 16
          %s91 = scalar_lea.vmem [#allocation2], %s90
          %s92 = smul.u32 2, %s13
          %s94 = ssub.s32 256, 256
          %95 = vsyncadd %s88, %s94
          %s96 = smul.addr %s92, 128
          %s97 = scalar_lea.hbm %s0, %s96
          %s98 = sshll.u32 %s91, 4
          %s99 = int_to_ptr.vmem [resolvable:$true] %s98
          %104 = dma.hbm_to_vmem [thread:$0]  %s97, 256, %s99, %s88, 128, 128, 8
        $region20: #{tpu_custom_call.1} parent=15 // pred_fallthru
          _
      $region16: #{tpu_custom_call.1} parent=5 // pred_fallthru
        _
      %p105 = scmp.le.s32.totalorder 1, %s13
      %p106 = scmp.lt.s32.totalorder %s13, 3
      %p107 = pnand %p105, %p106
      %p108 = pneg %p107
      // Predicated region
      $region21: #{tpu_custom_call.1} parent=5 // pred_check
        _
      $region22: #{tpu_custom_call.1} parent=5 // pred_check_branch
        %110 = sbr.rel (%p107) target = $region24
      $region23: #{tpu_custom_call.1} parent=5 // pred_region
        %s111 = ssub.s32 %s13, 1
        %s112 = sand.u32 %s26, 1
        %s113 = scalar_lea.sflag [#allocation3], %s112
        %s114 = sand.u32 %s26, 1
        %s115 = smul.addr %s114, 16
        %s116 = scalar_lea.vmem [#allocation2], %s115
        // Predicated region
        $region25: #{tpu_custom_call.1} parent=23 // pred_check
          %p117 = pneg %p39
        $region26: #{tpu_custom_call.1} parent=23 // pred_check_branch
          %119 = sbr.rel (%p117) target = $region28
        $region27: #{tpu_custom_call.1} parent=23 // pred_region
          %120 = dma.done %s113, 256
        $region28: #{tpu_custom_call.1} parent=23 // pred_fallthru
          _
        %s121 = sand.u32 %s26, 1
        %s122 = scalar_lea.sflag [#allocation3], %s121
        %s123 = sand.u32 %s26, 1
        %s124 = smul.addr %s123, 16
        %s125 = scalar_lea.vmem [#allocation2], %s124
        %p126 = pneg %p39
        %p127 = pneg %p36
        %p128 = pneg %p65
        %p129 = pneg %p62
        %s130 = sand.u32 %s52, 1
        %s131 = scalar_lea.sflag [#allocation4], %s130
        %s132 = sand.u32 %s52, 1
        %s133 = smul.addr %s132, 8
        %s134 = scalar_lea.vmem [#allocation5], %s133
        %s135 = smul.u32 2, %s18
        %s136 = smul.u32 2, %s18
        %v137 = vld [vmem:[%s116] sm:$0xff]
        %v138 = vld [vmem:[%s116 + $0x8] sm:$0xff]
        %v139 = vmul.f32 %v137, %v137
        %v140 = vmul.f32 %v138, %v138
        %141 = vadd.xlane.f32.xlu0 %v139
        %v142 = vpop.xlane.xlu0 %141
        %143 = vadd.xlane.f32.xlu0 %v140
        %v144 = vpop.xlane.xlu0 %143
        %v145 = vmax.f32 %v142, 1e-24
        %v146 = vmax.f32 %v144, 1e-24
        %v147 = vrsqrt.pop %v145
        %v148 = vrsqrt.pop %v146
        %v149 = vmul.f32 %v137, %v147
        %v150 = vmul.f32 %v138, %v148
        %v151 = vpack.c.bf16 %v150, %v149
        %v153 = vunpack.c.l.b16 %v151
        %v154 = vunpack.c.h.b16 %v151
        %v155 = vpack.c.b16 %v153, %v153
        %v156 = vpack.c.b16 %v154, %v154
        %159 = vst [vmem:[%s134] sm:$0xf] %v155
        %160 = vst [vmem:[%s134 + $0x4] sm:$0xf] %v156
        %s161 = sand.u32 %s52, 1
        %s162 = scalar_lea.sflag [#allocation4], %s161
        %s163 = sand.u32 %s52, 1
        %s164 = smul.addr %s163, 8
        %s165 = scalar_lea.vmem [#allocation5], %s164
        // Predicated region
        $region29: #{tpu_custom_call.1} parent=23 // pred_check
          %p166 = pneg %p62
        $region30: #{tpu_custom_call.1} parent=23 // pred_check_branch
          %168 = sbr.rel (%p166) target = $region32
        $region31: #{tpu_custom_call.1} parent=23 // pred_region
          %s169 = smul.u32 2, %s18
          %s171 = ssub.s32 128, 128
          %172 = vsyncadd %s162, %s171
          %s173 = smul.addr %s169, 64
          %s174 = scalar_lea.hbm %s1, %s173
          %s175 = sshll.u32 %s165, 4
          %s176 = int_to_ptr.vmem [resolvable:$true] %s175
          %181 = dma.vmem_to_hbm [thread:$0]  %s176, 128, %s174, %s162, 64, 64, 4
        $region32: #{tpu_custom_call.1} parent=23 // pred_fallthru
          _
      $region24: #{tpu_custom_call.1} parent=5 // pred_fallthru
        _
      %p182 = scmp.le.s32.totalorder 2, %s13
      // Predicated region
      $region33: #{tpu_custom_call.1} parent=5 // pred_check
        %p183 = pneg %p182
      $region34: #{tpu_custom_call.1} parent=5 // pred_check_branch
        %185 = sbr.rel (%p183) target = $region36
      $region35: #{tpu_custom_call.1} parent=5 // pred_region
        %s186 = ssub.s32 %s13, 2
        // Predicated region
        $region37: #{tpu_custom_call.1} parent=35 // pred_check
          %p187 = pneg %p68
        $region38: #{tpu_custom_call.1} parent=35 // pred_check_branch
          %189 = sbr.rel (%p187) target = $region40
        $region39: #{tpu_custom_call.1} parent=35 // pred_region
          %s190 = sand.u32 %s53, 1
          %s191 = scalar_lea.sflag [#allocation4], %s190
          %s192 = sand.u32 %s53, 1
          %s193 = smul.addr %s192, 8
          %s194 = scalar_lea.vmem [#allocation5], %s193
          %195 = dma.done %s191, 128
        $region40: #{tpu_custom_call.1} parent=35 // pred_fallthru
          _
      $region36: #{tpu_custom_call.1} parent=5 // pred_fallthru
        _
    $region6: #{tpu_custom_call.1} parent=1 // loop_footer
      %s17 = sadd.s32 1, %s13
    $region7: #{tpu_custom_call.1} parent=1 // loop_footer_branch
      %12 = sbr.rel target = $region3
    $region8: #{tpu_custom_call.1} parent=1 // loop_exit
      _
    %196 = vsyncpa [#allocation3], 1
    %s197 = scalar_lea.sflag [#allocation3], 1
    %198 = vsyncpa %s197, 1
    %199 = vsyncpa [#allocation4], 1
    %s200 = scalar_lea.sflag [#allocation4], 1
    %201 = vsyncpa %s200, 1

</llo_original>
